<compile_context>
chip_gen: v5e
topology: v5e:2x2
jax: 0.10.0
libtpu: 0.0.40
codegen_flags: <defaults>
</compile_context>

<pallas_src>
import functools
import math

import jax
import jax.numpy as jnp
from jax import lax
from jax.experimental import pallas as pl
from jax.experimental.pallas import tpu as pltpu

_INV_SQRT2 = 1.0 / math.sqrt(2.0)


def _round_up(v, m):
    return ((v + m - 1) // m) * m


# ---------------------------------------------------------------------------
# Chip-aware limits (v7x has 64 MiB VMEM / 2 TensorCores; v5e/v6e have 128 MiB).
# ---------------------------------------------------------------------------
@functools.lru_cache(maxsize=1)
def _chip_limits():
    vmem_phys = 128 * 1024 * 1024
    try:
        info = pltpu.get_tpu_info()
        vmem_phys = int(getattr(info, "vmem_capacity_bytes", vmem_phys))
    except Exception:
        pass
    kind = ""
    try:
        kind = jax.devices()[0].device_kind.lower()
    except Exception:
        pass
    v7x_class = (vmem_phys <= 80 * 1024 * 1024) or ("v7" in kind)
    if v7x_class:
        return {"vmem_budget": 40 << 20, "vmem_limit": 48 << 20,
                "tm_max": 256, "th_max": 512, "two_cores": True}
    return {"vmem_budget": 80 << 20, "vmem_limit": 96 << 20,
            "tm_max": 512, "th_max": 1024, "two_cores": False}


@functools.lru_cache(maxsize=1)
def _single_buffer_ok():
    """One-time capability check: does pipeline_mode=pl.Buffered(1) compile?"""
    def probe_kernel(x_ref, o_ref):
        o_ref[...] = x_ref[...] * 2.0

    try:
        call = pl.pallas_call(
            probe_kernel,
            out_shape=jax.ShapeDtypeStruct((16, 128), jnp.float32),
            grid_spec=pltpu.PrefetchScalarGridSpec(
                num_scalar_prefetch=0,
                grid=(2,),
                in_specs=[pl.BlockSpec((8, 128), lambda i: (0, 0),
                                       pipeline_mode=pl.Buffered(1))],
                out_specs=pl.BlockSpec((8, 128), lambda i: (i, 0)),
            ),
        )
        jax.jit(call).lower(jnp.zeros((8, 128), jnp.float32)).compile()
        return True
    except Exception:
        return False


# ---------------------------------------------------------------------------
# VMEM working-set model shared by the planner and the per-call tm picker.
# ---------------------------------------------------------------------------
def _working_set_bytes(mode, tm, th, e_p, h_p, x_bytes, out_bytes, w_bytes, wbuf):
    if mode == "fused":
        return (2 * tm * e_p * (x_bytes + out_bytes)   # x / out, double-buffered
                + tm * h_p * 4                         # f32 intermediate h
                + wbuf * 2 * e_p * h_p * w_bytes       # W1 + W2, fully resident
                + wbuf * (h_p + e_p) * 4)              # biases (f32)
    return (2 * tm * e_p * (x_bytes + out_bytes)       # x / out, double-buffered
            + tm * e_p * 4                             # f32 accumulator scratch
            + tm * th * 4                              # f32 intermediate h chunk
            + 2 * 2 * e_p * th * w_bytes               # W1/W2 chunks, double-buffered
            + 2 * (th + e_p) * 4)                      # biases


def _plan(E, H, w_bytes, chip, single_buf):
    """Batch-independent plan (mode / th / padded dims) so weights pad once."""
    e_p = _round_up(E, 128)
    h_full = _round_up(H, 128)
    budget = chip["vmem_budget"]
    wbuf = 1 if single_buf else 2
    tm_probe = chip["tm_max"]    # budget against the worst-case row tile
    xb = 4                       # assume f32 activations (worst case)

    if _working_set_bytes("fused", tm_probe, h_full, e_p, h_full,
                          xb, xb, w_bytes, wbuf) <= budget:
        return {"mode": "fused", "e_p": e_p, "h_p": h_full, "th": h_full}

    th = min(_round_up(chip["th_max"], 128), h_full)
    while th > 128 and _working_set_bytes(
            "streamed", tm_probe, th, e_p, _round_up(h_full, th),
            xb, xb, w_bytes, wbuf) > budget:
        th = max(128, (th // 256) * 128)               # ~halve, keep 128-aligned
    # Spread H evenly over the chunks so the last one is not mostly padding.
    n_h = -(-h_full // th)
    th = _round_up(-(-h_full // n_h), 128)
    return {"mode": "streamed", "e_p": e_p, "h_p": n_h * th, "th": th}


def _pick_tm(N, plan, x_bytes, out_bytes, w_bytes, chip, single_buf):
    n8 = _round_up(max(int(N), 1), 8)
    budget = chip["vmem_budget"]
    wbuf = 1 if single_buf else 2
    tm = min(chip["tm_max"], n8)
    if chip["two_cores"] and n8 >= 16:
        # Keep >= 2 row tiles so the "parallel" axis can span both TensorCores.
        tm = min(tm, _round_up((n8 + 1) // 2, 8))
    while tm > 8 and _working_set_bytes(
            plan["mode"], tm, plan["th"], plan["e_p"], plan["h_p"],
            x_bytes, out_bytes, w_bytes, wbuf) > budget:
        tm = max(8, _round_up(tm // 2, 8))
    return tm


# ---------------------------------------------------------------------------
# Kernels.
# ---------------------------------------------------------------------------
def _kernel_fused(x_ref, w1_ref, b1_ref, w2_ref, b2_ref, o_ref):
    """Whole H resident: fc1 -> GELU -> fc2 -> +b2 +x in one pass."""
    x = x_ref[...]
    h = jnp.dot(x.astype(w1_ref.dtype), w1_ref[...],
                preferred_element_type=jnp.float32)
    h = h + b1_ref[...].astype(jnp.float32)
    h = 0.5 * h * (1.0 + lax.erf(h * _INV_SQRT2))          # exact (erf) GELU
    y = jnp.dot(h.astype(w2_ref.dtype), w2_ref[...],
                preferred_element_type=jnp.float32)
    y = y + b2_ref[...].astype(jnp.float32) + x.astype(jnp.float32)
    o_ref[...] = y.astype(o_ref.dtype)


def _kernel_streamed(x_ref, w1_ref, b1_ref, w2_ref, b2_ref, o_ref, acc_ref):
    """H streamed on grid axis 1; f32 accumulator carries residual + b2."""
    h_idx = pl.program_id(1)
    x = x_ref[...]

    @pl.when(h_idx == 0)
    def _init():
        acc_ref[...] = x.astype(jnp.float32) + b2_ref[...].astype(jnp.float32)

    h = jnp.dot(x.astype(w1_ref.dtype), w1_ref[...],
                preferred_element_type=jnp.float32)
    h = h + b1_ref[...].astype(jnp.float32)
    h = 0.5 * h * (1.0 + lax.erf(h * _INV_SQRT2))
    acc_ref[...] += jnp.dot(h.astype(w2_ref.dtype), w2_ref[...],
                            preferred_element_type=jnp.float32)

    @pl.when(h_idx == pl.num_programs(1) - 1)
    def _finalize():
        o_ref[...] = acc_ref[...].astype(o_ref.dtype)


# ---------------------------------------------------------------------------
# pallas_call builder.
# ---------------------------------------------------------------------------
def _build_call(mode, out_dtype, x_dtype, w_dtype, n_p, e_p, h_p, tm, th,
                chip, single_buf):
    n_rows = n_p // tm
    xb = jnp.dtype(x_dtype).itemsize
    ob = jnp.dtype(out_dtype).itemsize
    wb = jnp.dtype(w_dtype).itemsize

    def spec(shape, index_map, constant):
        if constant and single_buf:
            return pl.BlockSpec(shape, index_map, pipeline_mode=pl.Buffered(1))
        return pl.BlockSpec(shape, index_map)

    if mode == "fused":
        grid = (n_rows,)
        in_specs = [
            spec((tm, e_p), lambda i: (i, 0), False),       # x tile
            spec((e_p, h_p), lambda i: (0, 0), True),       # W1 (resident)
            spec((1, h_p),   lambda i: (0, 0), True),       # b1
            spec((h_p, e_p), lambda i: (0, 0), True),       # W2 (resident)
            spec((1, e_p),   lambda i: (0, 0), True),       # b2
        ]
        out_spec = pl.BlockSpec((tm, e_p), lambda i: (i, 0))
        scratch = ()
        kernel = _kernel_fused
        dims = ("parallel",)
        w_reads = 1                       # constant index map -> DMA'd once
    else:
        n_h = h_p // th
        grid = (n_rows, n_h)              # reduction (H) axis last
        in_specs = [
            spec((tm, e_p), lambda i, h: (i, 0), False),     # x tile
            spec((e_p, th), lambda i, h: (0, h), False),     # W1 chunk
            spec((1, th),   lambda i, h: (0, h), False),     # b1 chunk
            spec((th, e_p), lambda i, h: (h, 0), False),     # W2 chunk
            spec((1, e_p),  lambda i, h: (0, 0), True),      # b2 (constant)
        ]
        out_spec = pl.BlockSpec((tm, e_p), lambda i, h: (i, 0))
        scratch = (pltpu.VMEM((tm, e_p), jnp.float32),)
        kernel = _kernel_streamed
        dims = ("parallel", "arbitrary")
        w_reads = n_rows                  # weights re-streamed per row tile

    bytes_accessed = (n_p * e_p * (xb + ob)
                      + w_reads * 2 * e_p * h_p * wb
                      + w_reads * (h_p + e_p) * 4)
    cost = pl.CostEstimate(
        flops=4 * n_p * e_p * h_p,
        transcendentals=n_p * h_p,
        bytes_accessed=int(bytes_accessed),
    )

    return pl.pallas_call(
        kernel,
        out_shape=jax.ShapeDtypeStruct((n_p, e_p), out_dtype),
        grid_spec=pltpu.PrefetchScalarGridSpec(
            num_scalar_prefetch=0,
            grid=grid,
            in_specs=in_specs,
            out_specs=out_spec,
            scratch_shapes=scratch,
        ),
        compiler_params=pltpu.CompilerParams(
            dimension_semantics=dims,
            vmem_limit_bytes=chip["vmem_limit"],
        ),
        cost_estimate=cost,
    )


# ---------------------------------------------------------------------------
# Public wrapper: pre-pads / pre-casts the weights once, returns jitted fwd.
# ---------------------------------------------------------------------------
def make_bottleneck(w1, b1, w2, b2, *, compute_dtype=jnp.bfloat16):
    """Build a fused Bottleneck forward for fixed parameters.

    w1: (E, H)  fc1 weight, pre-transposed to (in, out)
    b1: (H,)
    w2: (H, E)  fc2 weight, pre-transposed to (in, out)
    b2: (E,)
    Returns forward(x) for x of shape (..., E); output dtype == x dtype.
    """
    E, H = w1.shape
    assert w2.shape == (H, E) and b1.shape == (H,) and b2.shape == (E,)

    chip = _chip_limits()
    single_buf = _single_buffer_ok()
    w_bytes = jnp.dtype(compute_dtype).itemsize

    # Plan is batch-independent, so weights are padded & cast exactly once.
    plan = _plan(E, H, w_bytes, chip, single_buf)
    e_p, h_p = plan["e_p"], plan["h_p"]

    # Zero padding is exact: GELU(0)=0, padded W2 rows/cols are zero, and the
    # padded E columns / rows are sliced off below.
    w1_p = jnp.pad(w1, ((0, e_p - E), (0, h_p - H))).astype(compute_dtype)
    b1_p = jnp.pad(b1, (0, h_p - H)).astype(jnp.float32).reshape(1, h_p)
    w2_p = jnp.pad(w2, ((0, h_p - H), (0, e_p - E))).astype(compute_dtype)
    b2_p = jnp.pad(b2, (0, e_p - E)).astype(jnp.float32).reshape(1, e_p)

    @jax.jit
    def _fwd(x, w1_p, b1_p, w2_p, b2_p):
        lead = x.shape[:-1]
        x2 = x.reshape(-1, E)
        N = x2.shape[0]
        xb = x2.dtype.itemsize
        tm = _pick_tm(N, plan, xb, xb, w_bytes, chip, single_buf)
        n_p = _round_up(N, tm)
        x_p = jnp.pad(x2, ((0, n_p - N), (0, e_p - E)))
        call = _build_call(plan["mode"], x2.dtype, x2.dtype, compute_dtype,
                           n_p, e_p, h_p, tm, plan["th"], chip, single_buf)
        out_p = call(x_p, w1_p, b1_p, w2_p, b2_p)
        return out_p[:N, :E].reshape(*lead, E)

    def forward(x):
        return _fwd(x, w1_p, b1_p, w2_p, b2_p)

    return forward


def init_bottleneck_params(key, embed_dim, hidden_dim=None):
    # NOTE: mirrors Bottleneck.__init__ exactly, including its quirk that an
    # explicitly passed hidden_dim is replaced by embed_dim.
    hidden_dim = embed_dim // 2 if hidden_dim is None else embed_dim
    k1, k2, k3, k4 = jax.random.split(key, 4)
    lim1 = 1.0 / math.sqrt(embed_dim)
    lim2 = 1.0 / math.sqrt(hidden_dim)
    w1_pt = jax.random.uniform(k1, (hidden_dim, embed_dim), jnp.float32, -lim1, lim1)
    b1 = jax.random.uniform(k2, (hidden_dim,), jnp.float32, -lim1, lim1)
    w2_pt = jax.random.uniform(k3, (embed_dim, hidden_dim), jnp.float32, -lim2, lim2)
    b2 = jax.random.uniform(k4, (embed_dim,), jnp.float32, -lim2, lim2)
    # Pre-transpose PyTorch (out, in) weights to (in, out) for x @ W in-kernel.
    return w1_pt.T, b1, w2_pt.T, b2


def bottleneck_ref(x, w1, b1, w2, b2, compute_dtype=None):
    """Pure-JAX reference.  If compute_dtype is given, mirror the kernel's
    matmul-operand rounding (bf16 MXU path) so the comparison isolates kernel
    bugs from expected low-precision effects."""
    f32 = jnp.float32
    if compute_dtype is not None:
        xm = x.astype(compute_dtype).astype(f32)
        w1m = w1.astype(compute_dtype).astype(f32)
        w2m = w2.astype(compute_dtype).astype(f32)
    else:
        xm, w1m, w2m = x.astype(f32), w1.astype(f32), w2.astype(f32)
    h = xm @ w1m + b1
    h = 0.5 * h * (1.0 + lax.erf(h * _INV_SQRT2))
    if compute_dtype is not None:
        h = h.astype(compute_dtype).astype(f32)
    return h @ w2m + b2 + x.astype(f32)


if __name__ == "__main__":
    batch, seq, embed_dim = 2, 8, 32       # hidden_dim defaults to 32 // 2 = 16
    key = jax.random.PRNGKey(0)
    kx, kp = jax.random.split(key)

    x = jax.random.normal(kx, (batch, seq, embed_dim), jnp.float32)
    w1, b1, w2, b2 = init_bottleneck_params(kp, embed_dim)

    forward = make_bottleneck(w1, b1, w2, b2)
    out = jax.block_until_ready(forward(x))

    x2 = x.reshape(-1, embed_dim)
    ref_bf16 = bottleneck_ref(x2, w1, b1, w2, b2,
                              compute_dtype=jnp.bfloat16).reshape(x.shape)
    ref_f32 = bottleneck_ref(x2, w1, b1, w2, b2).reshape(x.shape)

    assert out.shape == x.shape
    assert jnp.allclose(out, ref_bf16, atol=5e-3, rtol=5e-3), \
        float(jnp.max(jnp.abs(out - ref_bf16)))
    assert jnp.allclose(out, ref_f32, atol=5e-2, rtol=5e-2), \
        float(jnp.max(jnp.abs(out - ref_f32)))

    print("KERNEL_OK")
</pallas_src>

<mosaic_0001>
module attributes {stable_mosaic.version = 11 : i64} {
  func.func @_kernel_fused(%arg0: i32, %arg1: memref<16x128xf32, #tpu.memory_space<vmem>>, %arg2: memref<128x128xbf16, #tpu.memory_space<vmem>>, %arg3: memref<1x128xf32, #tpu.memory_space<vmem>>, %arg4: memref<128x128xbf16, #tpu.memory_space<vmem>>, %arg5: memref<1x128xf32, #tpu.memory_space<vmem>>, %arg6: memref<16x128xf32, #tpu.memory_space<vmem>>) attributes {dimension_semantics = [#tpu.dimension_semantics<parallel>], iteration_bounds = array<i64: 1>, scalar_prefetch = 0 : i64, scratch_operands = 0 : i64, tpu.core_type = #tpu.core_type<tc>, window_params = [{transform_indices = @transform_0, window_bounds = array<i64: 16, 128>}, {pipeline_mode = #tpu.pipeline_mode<synchronous>, transform_indices = @transform_1, window_bounds = array<i64: 128, 128>}, {pipeline_mode = #tpu.pipeline_mode<synchronous>, transform_indices = @transform_2, window_bounds = array<i64: 1, 128>}, {pipeline_mode = #tpu.pipeline_mode<synchronous>, transform_indices = @transform_3, window_bounds = array<i64: 128, 128>}, {pipeline_mode = #tpu.pipeline_mode<synchronous>, transform_indices = @transform_4, window_bounds = array<i64: 1, 128>}, {transform_indices = @transform_5, window_bounds = array<i64: 16, 128>}]} {
    %c0 = arith.constant 0 : index
    %c0_0 = arith.constant 0 : index
    %0 = vector.load %arg1[%c0, %c0_0] : memref<16x128xf32, #tpu.memory_space<vmem>>, vector<16x128xf32>
    %1 = arith.truncf %0 : vector<16x128xf32> to vector<16x128xbf16>
    %c0_1 = arith.constant 0 : index
    %c0_2 = arith.constant 0 : index
    %2 = vector.load %arg2[%c0_1, %c0_2] : memref<128x128xbf16, #tpu.memory_space<vmem>>, vector<128x128xbf16>
    %cst = arith.constant dense<0.000000e+00> : vector<16x128xf32>
    %3 = tpu.matmul %1, %2, %cst {dimension_numbers = #tpu.dot_dimension_numbers<[1], [0], [0], [1], [0, 0, 1, 1], [], []>} : vector<16x128xbf16>, vector<128x128xbf16>, vector<16x128xf32> -> vector<16x128xf32>
    %c0_3 = arith.constant 0 : index
    %c0_4 = arith.constant 0 : index
    %4 = vector.load %arg3[%c0_3, %c0_4] : memref<1x128xf32, #tpu.memory_space<vmem>>, vector<1x128xf32>
    %5 = vector.broadcast %4 : vector<1x128xf32> to vector<16x128xf32>
    %6 = arith.addf %3, %5 : vector<16x128xf32>
    %cst_5 = arith.constant 5.000000e-01 : f32
    %7 = vector.broadcast %cst_5 : f32 to vector<16x128xf32>
    %8 = arith.mulf %7, %6 : vector<16x128xf32>
    %cst_6 = arith.constant 0.707106769 : f32
    %9 = vector.broadcast %cst_6 : f32 to vector<16x128xf32>
    %10 = arith.mulf %6, %9 : vector<16x128xf32>
    %11 = math.erf %10 : vector<16x128xf32>
    %cst_7 = arith.constant 1.000000e+00 : f32
    %12 = vector.broadcast %cst_7 : f32 to vector<16x128xf32>
    %13 = arith.addf %12, %11 : vector<16x128xf32>
    %14 = arith.mulf %8, %13 : vector<16x128xf32>
    %15 = arith.truncf %14 : vector<16x128xf32> to vector<16x128xbf16>
    %c0_8 = arith.constant 0 : index
    %c0_9 = arith.constant 0 : index
    %16 = vector.load %arg4[%c0_8, %c0_9] : memref<128x128xbf16, #tpu.memory_space<vmem>>, vector<128x128xbf16>
    %cst_10 = arith.constant dense<0.000000e+00> : vector<16x128xf32>
    %17 = tpu.matmul %15, %16, %cst_10 {dimension_numbers = #tpu.dot_dimension_numbers<[1], [0], [0], [1], [0, 0, 1, 1], [], []>} : vector<16x128xbf16>, vector<128x128xbf16>, vector<16x128xf32> -> vector<16x128xf32>
    %c0_11 = arith.constant 0 : index
    %c0_12 = arith.constant 0 : index
    %18 = vector.load %arg5[%c0_11, %c0_12] : memref<1x128xf32, #tpu.memory_space<vmem>>, vector<1x128xf32>
    %19 = vector.broadcast %18 : vector<1x128xf32> to vector<16x128xf32>
    %20 = arith.addf %17, %19 : vector<16x128xf32>
    %21 = arith.addf %20, %0 : vector<16x128xf32>
    %c0_13 = arith.constant 0 : index
    %c0_14 = arith.constant 0 : index
    %22 = vector.load %arg6[%c0_13, %c0_14] : memref<16x128xf32, #tpu.memory_space<vmem>>, vector<16x128xf32>
    tpu.vector_store %arg6[%c0_13, %c0_14], %21 {strides = array<i32>} : memref<16x128xf32, #tpu.memory_space<vmem>>, vector<16x128xf32>,
    return
  }
  func.func @transform_0(%arg0: i32) -> (i32, i32) {
    %c0_i32 = arith.constant 0 : i32
    %c0_i32_0 = arith.constant 0 : i32
    return %arg0, %c0_i32 : i32, i32
  }
  func.func @transform_1(%arg0: i32) -> (i32, i32) {
    %c0_i32 = arith.constant 0 : i32
    %c0_i32_0 = arith.constant 0 : i32
    %c0_i32_1 = arith.constant 0 : i32
    return %c0_i32, %c0_i32_0 : i32, i32
  }
  func.func @transform_2(%arg0: i32) -> (i32, i32) {
    %c0_i32 = arith.constant 0 : i32
    %c0_i32_0 = arith.constant 0 : i32
    %c0_i32_1 = arith.constant 0 : i32
    return %c0_i32, %c0_i32_0 : i32, i32
  }
  func.func @transform_3(%arg0: i32) -> (i32, i32) {
    %c0_i32 = arith.constant 0 : i32
    %c0_i32_0 = arith.constant 0 : i32
    %c0_i32_1 = arith.constant 0 : i32
    return %c0_i32, %c0_i32_0 : i32, i32
  }
  func.func @transform_4(%arg0: i32) -> (i32, i32) {
    %c0_i32 = arith.constant 0 : i32
    %c0_i32_0 = arith.constant 0 : i32
    %c0_i32_1 = arith.constant 0 : i32
    return %c0_i32, %c0_i32_0 : i32, i32
  }
  func.func @transform_5(%arg0: i32) -> (i32, i32) {
    %c0_i32 = arith.constant 0 : i32
    %c0_i32_0 = arith.constant 0 : i32
    return %arg0, %c0_i32 : i32, i32
  }
}

</mosaic_0001>

<llo_original>
// kernel: _fwd.1
$region0: #{_fwd.1}
  #allocation0 [shape = 'u32[]', space=smem, size = 0x4, offset = 0x4, fixed_abs, tag = 'smem constant byte address 0x4 - core index']
  #allocation1 [shape = 'u32[72,128]{1,0:T(1,128)}', space=vmem, size = 0x9000, scoped, tag = 'internal scratch']
  %s0 = inlined_call_operand.vmem [shape: f32[16,128], index: 0, kind: input, shape index: {}]
  %s1 = inlined_call_operand.hbm [shape: bf16[128,128], index: 1, kind: input, shape index: {}]
  %s2 = inlined_call_operand.vmem [shape: f32[1,128], index: 2, kind: input, shape index: {}]
  %s3 = inlined_call_operand.hbm [shape: bf16[128,128], index: 3, kind: input, shape index: {}]
  %s4 = inlined_call_operand.vmem [shape: f32[1,128], index: 4, kind: input, shape index: {}]
  %s5 = inlined_call_operand.vmem [shape: f32[16,128], index: 5, kind: output, shape index: {}]
  %s6 = sld [smem:[#allocation0]]
  $region38: #{_fwd.1} parent=0
    _
  %s8 = ssub.s32 1, %s6
  %s9 = scalar_select 0, %s8, %s6
  $region1: #{_fwd.1} parent=0
    #allocation2 [shape = 'u8[32768]{0}', space=vmem, size = 0x8000, scoped, tag = 'input window, operand 1, single buffered']
    #allocation3 [shape = 's32[1]{0}', space=sflag, size = 0x4, scoped, tag = 'scoped memory for _fwd.1']
    #allocation4 [shape = 'u8[32768]{0}', space=vmem, size = 0x8000, scoped, tag = 'input window, operand 3, single buffered']
    #allocation5 [shape = 's32[1]{0}', space=sflag, size = 0x4, scoped, tag = 'scoped memory for _fwd.1']
    %10 = vsyncpa [#allocation3], 0
    %11 = vsyncpa [#allocation5], 0
    // Predicated region
    $region2: #{_fwd.1} parent=1 // pred_check
      _
    $region3: #{_fwd.1} parent=1 // pred_check_branch
      %13 = sbr.rel (0) target = $region5
    $region4: #{_fwd.1} parent=1 // pred_region
      _
    $region5: #{_fwd.1} parent=1 // pred_fallthru
      _
    // Predicated region
    $region6: #{_fwd.1} parent=1 // pred_check
      _
    $region7: #{_fwd.1} parent=1 // pred_check_branch
      %15 = sbr.rel (0) target = $region9
    $region8: #{_fwd.1} parent=1 // pred_region
      %17 = vsyncadd [#allocation3], 0
      %s18 = sshll.u32 %s1, 4
      %s19 = int_to_ptr.hbm [resolvable:$true] %s18
      %s20 = sshll.u32 [#allocation2], 4
      %s21 = int_to_ptr.vmem [resolvable:$true] %s20
      %26 = dma.hbm_to_vmem [thread:$0]  %s19, 1024, %s21, [#allocation3], 64, 64, 4
    $region9: #{_fwd.1} parent=1 // pred_fallthru
      _
    // Predicated region
    $region10: #{_fwd.1} parent=1 // pred_check
      _
    $region11: #{_fwd.1} parent=1 // pred_check_branch
      %28 = sbr.rel (0) target = $region13
    $region12: #{_fwd.1} parent=1 // pred_region
      _
    $region13: #{_fwd.1} parent=1 // pred_fallthru
      _
    // Predicated region
    $region14: #{_fwd.1} parent=1 // pred_check
      _
    $region15: #{_fwd.1} parent=1 // pred_check_branch
      %30 = sbr.rel (0) target = $region17
    $region16: #{_fwd.1} parent=1 // pred_region
      %32 = vsyncadd [#allocation5], 0
      %s33 = sshll.u32 %s3, 4
      %s34 = int_to_ptr.hbm [resolvable:$true] %s33
      %s35 = sshll.u32 [#allocation4], 4
      %s36 = int_to_ptr.vmem [resolvable:$true] %s35
      %41 = dma.hbm_to_vmem [thread:$0]  %s34, 1024, %s36, [#allocation5], 64, 64, 4
    $region17: #{_fwd.1} parent=1 // pred_fallthru
      _
    // Predicated region
    $region18: #{_fwd.1} parent=1 // pred_check
      _
    $region19: #{_fwd.1} parent=1 // pred_check_branch
      %43 = sbr.rel (0) target = $region21
    $region20: #{_fwd.1} parent=1 // pred_region
      _
    $region21: #{_fwd.1} parent=1 // pred_fallthru
      _
    // Predicated region
    $region22: #{_fwd.1} parent=1 // pred_check
      _
    $region23: #{_fwd.1} parent=1 // pred_check_branch
      %45 = sbr.rel (0) target = $region25
    $region24: #{_fwd.1} parent=1 // pred_region
      %47 = dma.done [#allocation3], 1024
    $region25: #{_fwd.1} parent=1 // pred_fallthru
      _
    // Predicated region
    $region26: #{_fwd.1} parent=1 // pred_check
      _
    $region27: #{_fwd.1} parent=1 // pred_check_branch
      %49 = sbr.rel (0) target = $region29
    $region28: #{_fwd.1} parent=1 // pred_region
      %51 = dma.done [#allocation5], 1024
    $region29: #{_fwd.1} parent=1 // pred_fallthru
      _
    %v52 = vld [vmem:[%s0] sm:$0xff]
    %v53 = vld [vmem:[%s0 + $0x8] sm:$0xff]
    %v54 = vpack.c.bf16 %v53, %v52
    %v55 = vld [vmem:[#allocation2] sm:$0xf]
    %v56 = vld [vmem:[#allocation2 + $0x4] sm:$0xf]
    %v57 = vld [vmem:[#allocation2 + $0x8] sm:$0xf]
    %v58 = vld [vmem:[#allocation2 + $0xc] sm:$0xf]
    %v59 = vld [vmem:[#allocation2 + $0x10] sm:$0xf]
    %v60 = vld [vmem:[#allocation2 + $0x14] sm:$0xf]
    %v61 = vld [vmem:[#allocation2 + $0x18] sm:$0xf]
    %v62 = vld [vmem:[#allocation2 + $0x1c] sm:$0xf]
    %v63 = vld [vmem:[#allocation2 + $0x20] sm:$0xf]
    %v64 = vld [vmem:[#allocation2 + $0x24] sm:$0xf]
    %v65 = vld [vmem:[#allocation2 + $0x28] sm:$0xf]
    %v66 = vld [vmem:[#allocation2 + $0x2c] sm:$0xf]
    %v67 = vld [vmem:[#allocation2 + $0x30] sm:$0xf]
    %v68 = vld [vmem:[#allocation2 + $0x34] sm:$0xf]
    %v69 = vld [vmem:[#allocation2 + $0x38] sm:$0xf]
    %v70 = vld [vmem:[#allocation2 + $0x3c] sm:$0xf]
    %v71 = vld [vmem:[%s2] sm:$0x1]
    %v73 = vperm.slane %v71, 0
    %v91 = vunpack.c.l.b16 %v55
    %v92 = vunpack.c.l.b16 %v56
    %v93 = vunpack.c.l.b16 %v57
    %v94 = vunpack.c.l.b16 %v58
    %v95 = vunpack.c.l.b16 %v59
    %v96 = vunpack.c.l.b16 %v60
    %v97 = vunpack.c.l.b16 %v61
    %v98 = vunpack.c.l.b16 %v62
    %v99 = vunpack.c.l.b16 %v63
    %v100 = vunpack.c.l.b16 %v64
    %v101 = vunpack.c.l.b16 %v65
    %v102 = vunpack.c.l.b16 %v66
    %v103 = vunpack.c.l.b16 %v67
    %v104 = vunpack.c.l.b16 %v68
    %v105 = vunpack.c.l.b16 %v69
    %v106 = vunpack.c.l.b16 %v70
    %v107 = vpack.c.b16 %v92, %v91
    %v108 = vpack.c.b16 %v94, %v93
    %v109 = vpack.c.b16 %v96, %v95
    %v110 = vpack.c.b16 %v98, %v97
    %v111 = vpack.c.b16 %v100, %v99
    %v112 = vpack.c.b16 %v102, %v101
    %v113 = vpack.c.b16 %v104, %v103
    %v114 = vpack.c.b16 %v106, %v105
    %123 = vmatpush.bf16.msra.mxu0 %v114
    %124 = vmatpush.bf16.msra.mxu0 %v113
    %125 = vmatpush.bf16.msra.mxu0 %v112
    %126 = vmatpush.bf16.msra.mxu0 %v111
    %127 = vmatpush.bf16.msra.mxu0 %v110
    %128 = vmatpush.bf16.msra.mxu0 %v109
    %129 = vmatpush.bf16.msra.mxu0 %v108
    %130 = vmatpush.bf16.msra.mxu0 %v107
    %131 = vmatmul.bf16.gmra.mxu0 %v54
    %v132 = vpop.f32.mrf.mxu0
    %v133 = vadd.f32 %v73, %v132
    %v134 = vpop.f32.mrf.mxu0
    %v135 = vadd.f32 %v73, %v134
    %136 = vdwg.mxu0
    %v137 = vmul.f32 %v133, 0.5
    %v138 = vmul.f32 %v135, 0.5
    %v139 = vmul.f32 %v133, 0.70710677
    %v140 = vmul.f32 %v135, 0.70710677
    %v141 = vmul.f32 %v139, %v139
    %v142 = vmin.f32 16.0, %v141
    %v143 = vmul.f32 %v142, 2.1237322e-06
    %v144 = vadd.f32 %v143, 0.00028619796
    %v145 = vmul.f32 %v142, %v144
    %v146 = vadd.f32 %v145, 0.0036580483
    %v147 = vmul.f32 %v142, %v146
    %v148 = vadd.f32 %v147, 0.05243302
    %v149 = vmul.f32 %v142, %v148
    %v150 = vadd.f32 %v149, 0.18741608
    %v151 = vmul.f32 %v142, %v150
    %v152 = vadd.f32 %v151, 1.1283791
    %v153 = vmul.f32 %v139, %v152
    %v154 = vmul.f32 %v142, 3.8918573e-05
    %v155 = vadd.f32 %v154, 0.001143296
    %v156 = vmul.f32 %v142, %v155
    %v157 = vadd.f32 %v156, 0.014752088
    %v158 = vmul.f32 %v142, %v157
    %v159 = vadd.f32 %v158, 0.112945676
    %v160 = vmul.f32 %v142, %v159
    %v161 = vadd.f32 %v160, 0.4994258
    %v162 = vmul.f32 %v142, %v161
    %v163 = vadd.f32 %v162, 1.0
    %v164 = vrcp.pop %v163
    %v165 = vmul.f32 %v163, %v164
    %v166 = vsub.f32 1.0, %v165
    %v167 = vmul.f32 %v164, %v166
    %v168 = vadd.f32 %v164, %v167
    %vm169 = vweird.f32 %v163
    %vm170 = vweird.f32 %v164
    %vm171 = vmor %vm169, %vm170
    %v172 = vsel %vm171, %v164, %v168
    %v173 = vand.u32 2147483647, %v163
    %vm174 = vcmp.eq.f32.partialorder %v173, 8.507059e+37
    %v175 = vand.u32 %v163, 2147483648
    %v176 = vor.u32 1.1754944e-38, %v175
    %v177 = vsel %vm174, %v176, %v172
    %v178 = vmul.f32 %v153, %v177
    %v179 = vmin.f32 %v178, 1.0
    %v180 = vmax.f32 %v179, -1.0
    %v181 = vmul.f32 %v140, %v140
    %v182 = vmin.f32 16.0, %v181
    %v183 = vmul.f32 %v182, 2.1237322e-06
    %v184 = vadd.f32 %v183, 0.00028619796
    %v185 = vmul.f32 %v182, %v184
    %v186 = vadd.f32 %v185, 0.0036580483
    %v187 = vmul.f32 %v182, %v186
    %v188 = vadd.f32 %v187, 0.05243302
    %v189 = vmul.f32 %v182, %v188
    %v190 = vadd.f32 %v189, 0.18741608
    %v191 = vmul.f32 %v182, %v190
    %v192 = vadd.f32 %v191, 1.1283791
    %v193 = vmul.f32 %v140, %v192
    %v194 = vmul.f32 %v182, 3.8918573e-05
    %v195 = vadd.f32 %v194, 0.001143296
    %v196 = vmul.f32 %v182, %v195
    %v197 = vadd.f32 %v196, 0.014752088
    %v198 = vmul.f32 %v182, %v197
    %v199 = vadd.f32 %v198, 0.112945676
    %v200 = vmul.f32 %v182, %v199
    %v201 = vadd.f32 %v200, 0.4994258
    %v202 = vmul.f32 %v182, %v201
    %v203 = vadd.f32 %v202, 1.0
    %v204 = vrcp.pop %v203
    %v205 = vmul.f32 %v203, %v204
    %v206 = vsub.f32 1.0, %v205
    %v207 = vmul.f32 %v204, %v206
    %v208 = vadd.f32 %v204, %v207
    %vm209 = vweird.f32 %v203
    %vm210 = vweird.f32 %v204
    %vm211 = vmor %vm209, %vm210
    %v212 = vsel %vm211, %v204, %v208
    %v213 = vand.u32 2147483647, %v203
    %vm214 = vcmp.eq.f32.partialorder %v213, 8.507059e+37
    %v215 = vand.u32 %v203, 2147483648
    %v216 = vor.u32 1.1754944e-38, %v215
    %v217 = vsel %vm214, %v216, %v212
    %v218 = vmul.f32 %v193, %v217
    %v219 = vmin.f32 %v218, 1.0
    %v220 = vmax.f32 %v219, -1.0
    %v221 = vadd.f32 %v180, 1.0
    %v222 = vadd.f32 %v220, 1.0
    %v223 = vmul.f32 %v137, %v221
    %v224 = vmul.f32 %v138, %v222
    %v225 = vpack.c.bf16 %v224, %v223
    %v226 = vld [vmem:[#allocation4] sm:$0xf]
    %v227 = vld [vmem:[#allocation4 + $0x4] sm:$0xf]
    %v228 = vld [vmem:[#allocation4 + $0x8] sm:$0xf]
    %v229 = vld [vmem:[#allocation4 + $0xc] sm:$0xf]
    %v230 = vld [vmem:[#allocation4 + $0x10] sm:$0xf]
    %v231 = vld [vmem:[#allocation4 + $0x14] sm:$0xf]
    %v232 = vld [vmem:[#allocation4 + $0x18] sm:$0xf]
    %v233 = vld [vmem:[#allocation4 + $0x1c] sm:$0xf]
    %v234 = vld [vmem:[#allocation4 + $0x20] sm:$0xf]
    %v235 = vld [vmem:[#allocation4 + $0x24] sm:$0xf]
    %v236 = vld [vmem:[#allocation4 + $0x28] sm:$0xf]
    %v237 = vld [vmem:[#allocation4 + $0x2c] sm:$0xf]
    %v238 = vld [vmem:[#allocation4 + $0x30] sm:$0xf]
    %v239 = vld [vmem:[#allocation4 + $0x34] sm:$0xf]
    %v240 = vld [vmem:[#allocation4 + $0x38] sm:$0xf]
    %v241 = vld [vmem:[#allocation4 + $0x3c] sm:$0xf]
    %v242 = vld [vmem:[%s4] sm:$0x1]
    %v244 = vperm.slane %v242, 0
    %v262 = vunpack.c.l.b16 %v226
    %v263 = vunpack.c.l.b16 %v227
    %v264 = vunpack.c.l.b16 %v228
    %v265 = vunpack.c.l.b16 %v229
    %v266 = vunpack.c.l.b16 %v230
    %v267 = vunpack.c.l.b16 %v231
    %v268 = vunpack.c.l.b16 %v232
    %v269 = vunpack.c.l.b16 %v233
    %v270 = vunpack.c.l.b16 %v234
    %v271 = vunpack.c.l.b16 %v235
    %v272 = vunpack.c.l.b16 %v236
    %v273 = vunpack.c.l.b16 %v237
    %v274 = vunpack.c.l.b16 %v238
    %v275 = vunpack.c.l.b16 %v239
    %v276 = vunpack.c.l.b16 %v240
    %v277 = vunpack.c.l.b16 %v241
    %v278 = vpack.c.b16 %v263, %v262
    %v279 = vpack.c.b16 %v265, %v264
    %v280 = vpack.c.b16 %v267, %v266
    %v281 = vpack.c.b16 %v269, %v268
    %v282 = vpack.c.b16 %v271, %v270
    %v283 = vpack.c.b16 %v273, %v272
    %v284 = vpack.c.b16 %v275, %v274
    %v285 = vpack.c.b16 %v277, %v276
    %294 = vmatpush.bf16.msra.mxu0 %v285
    %295 = vmatpush.bf16.msra.mxu0 %v284
    %296 = vmatpush.bf16.msra.mxu0 %v283
    %297 = vmatpush.bf16.msra.mxu0 %v282
    %298 = vmatpush.bf16.msra.mxu0 %v281
    %299 = vmatpush.bf16.msra.mxu0 %v280
    %300 = vmatpush.bf16.msra.mxu0 %v279
    %301 = vmatpush.bf16.msra.mxu0 %v278
    %302 = vmatmul.bf16.gmra.mxu0 %v225
    %v303 = vpop.f32.mrf.mxu0
    %v304 = vadd.f32 %v244, %v303
    %v305 = vpop.f32.mrf.mxu0
    %v306 = vadd.f32 %v244, %v305
    %307 = vdwg.mxu0
    %v308 = vadd.f32 %v304, %v52
    %v309 = vadd.f32 %v306, %v53
    %310 = vst [vmem:[%s5] sm:$0xff] %v308
    %311 = vst [vmem:[%s5 + $0x8] sm:$0xff] %v309
    // Predicated region
    $region30: #{_fwd.1} parent=1 // pred_check
      _
    $region31: #{_fwd.1} parent=1 // pred_check_branch
      %313 = sbr.rel (0) target = $region33
    $region32: #{_fwd.1} parent=1 // pred_region
      _
    $region33: #{_fwd.1} parent=1 // pred_fallthru
      _
    // Predicated region
    $region34: #{_fwd.1} parent=1 // pred_check
      _
    $region35: #{_fwd.1} parent=1 // pred_check_branch
      %315 = sbr.rel (0) target = $region37
    $region36: #{_fwd.1} parent=1 // pred_region
      _
    $region37: #{_fwd.1} parent=1 // pred_fallthru
      _
    %316 = vsyncpa [#allocation3], 1
    %317 = vsyncpa [#allocation5], 1

</llo_original>
